<compile_context>
chip_gen: v7x
topology: tpu7x:2x2x1
jax: 0.10.0
libtpu: 0.0.40
codegen_flags: <defaults>
</compile_context>

<pallas_src>
import jax
import jax.numpy as jnp
from jax import lax
from jax.experimental import pallas as pl
from jax.experimental.pallas import tpu as pltpu


def _round_up(x, m):
    return ((x + m - 1) // m) * m


def _dyn_tanh_kernel(x_ref, xs_ref, wg_ref, wb_ref, bg_ref, bb_ref, o_ref):
    # x_ref : (tm, Dp)  full row block (matmul operand)
    # xs_ref: (tm, tn)  column slice of the same rows (elementwise operand)
    # wg_ref, wb_ref: (tn, Dp)  PyTorch (out, in) layout -> contract last dims
    # bg_ref, bb_ref: (1, tn)
    # o_ref : (tm, tn)
    x = x_ref[...]
    if x.dtype != wg_ref.dtype:
        x = x.astype(wg_ref.dtype)
    dn = (((1,), (1,)), ((), ()))      # x[m,k] * w[n,k] -> (m,n), i.e. x @ W^T
    gamma = lax.dot_general(x, wg_ref[...], dn,
                            preferred_element_type=jnp.float32) + bg_ref[...]
    beta = lax.dot_general(x, wb_ref[...], dn,
                           preferred_element_type=jnp.float32) + bb_ref[...]
    xs = xs_ref[...].astype(jnp.float32)
    o_ref[...] = jnp.tanh(gamma * xs + beta).astype(o_ref.dtype)


def dyn_tanh_norm(x, weight, bias, *, tm=256, tn_max=512, param_dtype=None):
    """Fused DynTanhNorm.

    x:      (..., D)
    weight: (2D, D)   -- PyTorch nn.Linear(D, 2D) layout
    bias:   (2D,)
    tm:     row tile (sweep 256-512; a multiple of 256 matches the v6e MXU).
    param_dtype: optionally cast the projection weights (e.g. jnp.bfloat16)
                 to halve weight DMA/VMEM; MXU accumulation stays f32.
    """
    orig_shape = x.shape
    D = orig_shape[-1]
    assert weight.shape == (2 * D, D) and bias.shape == (2 * D,)

    x2d = x.reshape(-1, D)
    M = x2d.shape[0]

    # Split gamma / beta halves of the projection.
    wg, wb = weight[:D], weight[D:]
    bg, bb = bias[:D], bias[D:]
    if param_dtype is not None:
        wg, wb = wg.astype(param_dtype), wb.astype(param_dtype)

    # Lane-dense feature dim; row dim padded up to the row tile (no divisibility
    # assert -- arbitrary batch*seq supported).
    Dp = _round_up(D, 128)
    tm = max(8, min(_round_up(tm, 8), _round_up(M, 8)))
    Mp = _round_up(M, tm)
    tn = min(Dp, _round_up(tn_max, 128))
    while Dp % tn:                       # tn must divide Dp; 128 always does.
        tn -= 128
    num_m, num_n = Mp // tm, Dp // tn
    # TODO(synk): for very large D (weight block tn*Dp no longer fitting VMEM)
    # add a K grid axis with an f32 accumulator scratch.

    if Mp != M or Dp != D:
        x2d = jnp.pad(x2d, ((0, Mp - M), (0, Dp - D)))
    if Dp != D:
        wg = jnp.pad(wg, ((0, Dp - D), (0, Dp - D)))
        wb = jnp.pad(wb, ((0, Dp - D), (0, Dp - D)))
        bg = jnp.pad(bg, (0, Dp - D))
        bb = jnp.pad(bb, (0, Dp - D))
    bg2 = bg.reshape(1, Dp)
    bb2 = bb.reshape(1, Dp)

    # Weight / bias block index is constant over the whole grid when num_n == 1:
    # a single VMEM buffer suffices (saves a full extra weight copy).
    param_mode = pl.Buffered(1) if num_n == 1 else None

    def _spec(shape, imap, mode=None):
        if mode is None:
            return pl.BlockSpec(shape, imap)
        return pl.BlockSpec(shape, imap, pipeline_mode=mode)

    in_specs = [
        _spec((tm, Dp), lambda i, j: (i, 0)),               # x rows (for dots)
        _spec((tm, tn), lambda i, j: (i, j)),               # x cols (elementwise)
        _spec((tn, Dp), lambda i, j: (j, 0), param_mode),   # Wg
        _spec((tn, Dp), lambda i, j: (j, 0), param_mode),   # Wb
        _spec((1, tn), lambda i, j: (0, j), param_mode),    # bg
        _spec((1, tn), lambda i, j: (0, j), param_mode),    # bb
    ]
    out_spec = pl.BlockSpec((tm, tn), lambda i, j: (i, j))

    # Scoped-VMEM budget from the actual block footprint (+ headroom); the
    # default scoped limit would otherwise reject large row tiles.
    x_bytes = x2d.dtype.itemsize
    w_bytes = wg.dtype.itemsize
    b_bytes = bg2.dtype.itemsize
    o_bytes = x2d.dtype.itemsize
    wbuf = 1 if num_n == 1 else 2
    footprint = (
        2 * tm * Dp * x_bytes            # x row block (double-buffered)
        + 2 * tm * tn * x_bytes          # x column block
        + wbuf * 2 * tn * Dp * w_bytes   # Wg + Wb
        + wbuf * 2 * tn * b_bytes        # bg + bb
        + 2 * tm * tn * o_bytes          # output block
    )
    vmem_limit = min(max(int(footprint * 1.3) + (4 << 20), 16 << 20), 120 << 20)

    out = pl.pallas_call(
        _dyn_tanh_kernel,
        out_shape=jax.ShapeDtypeStruct((Mp, Dp), x.dtype),
        grid_spec=pltpu.PrefetchScalarGridSpec(
            num_scalar_prefetch=0,
            grid=(num_m, num_n),
            in_specs=in_specs,
            out_specs=out_spec,
        ),
        compiler_params=pltpu.CompilerParams(
            dimension_semantics=("parallel", "parallel"),
            vmem_limit_bytes=vmem_limit,
        ),
    )(x2d, x2d, wg, wb, bg2, bb2)

    if Mp != M or Dp != D:
        out = out[:M, :D]
    return out.reshape(orig_shape)


def _reference(x, weight, bias):
    gb = jnp.einsum("...d,ed->...e", x, weight) + bias
    d = x.shape[-1]
    gamma, beta = gb[..., :d], gb[..., d:]
    return jnp.tanh(gamma * x + beta)


if __name__ == "__main__":
    key = jax.random.PRNGKey(0)
    batch, seq, embed_dim = 2, 8, 32

    kx, kw, kb = jax.random.split(key, 3)
    x = jax.random.normal(kx, (batch, seq, embed_dim), dtype=jnp.float32)

    # Deterministic param init mimicking nn.Linear(embed_dim, 2*embed_dim):
    # weight (2D, D), bias (2D,), uniform(-1/sqrt(D), 1/sqrt(D)).
    bound = 1.0 / (embed_dim ** 0.5)
    weight = jax.random.uniform(
        kw, (2 * embed_dim, embed_dim), minval=-bound, maxval=bound,
        dtype=jnp.float32)
    bias = jax.random.uniform(
        kb, (2 * embed_dim,), minval=-bound, maxval=bound, dtype=jnp.float32)

    out = dyn_tanh_norm(x, weight, bias)
    out = jax.block_until_ready(out)

    ref = _reference(x, weight, bias)
    assert out.shape == x.shape
    assert jnp.allclose(out, ref, atol=1e-5, rtol=1e-5)

    print("KERNEL_OK")
</pallas_src>

<mosaic_0001>
module attributes {stable_mosaic.version = 11 : i64} {
  func.func @_dyn_tanh_kernel(%arg0: i32, %arg1: i32, %arg2: memref<16x128xf32, #tpu.memory_space<vmem>>, %arg3: memref<16x128xf32, #tpu.memory_space<vmem>>, %arg4: memref<128x128xf32, #tpu.memory_space<vmem>>, %arg5: memref<128x128xf32, #tpu.memory_space<vmem>>, %arg6: memref<1x128xf32, #tpu.memory_space<vmem>>, %arg7: memref<1x128xf32, #tpu.memory_space<vmem>>, %arg8: memref<16x128xf32, #tpu.memory_space<vmem>>) attributes {dimension_semantics = [#tpu.dimension_semantics<parallel>, #tpu.dimension_semantics<parallel>], iteration_bounds = array<i64: 1, 1>, scalar_prefetch = 0 : i64, scratch_operands = 0 : i64, tpu.core_type = #tpu.core_type<tc>, window_params = [{transform_indices = @transform_0, window_bounds = array<i64: 16, 128>}, {transform_indices = @transform_1, window_bounds = array<i64: 16, 128>}, {pipeline_mode = #tpu.pipeline_mode<synchronous>, transform_indices = @transform_2, window_bounds = array<i64: 128, 128>}, {pipeline_mode = #tpu.pipeline_mode<synchronous>, transform_indices = @transform_3, window_bounds = array<i64: 128, 128>}, {pipeline_mode = #tpu.pipeline_mode<synchronous>, transform_indices = @transform_4, window_bounds = array<i64: 1, 128>}, {pipeline_mode = #tpu.pipeline_mode<synchronous>, transform_indices = @transform_5, window_bounds = array<i64: 1, 128>}, {transform_indices = @transform_6, window_bounds = array<i64: 16, 128>}]} {
    %c0 = arith.constant 0 : index
    %c0_0 = arith.constant 0 : index
    %0 = vector.load %arg2[%c0, %c0_0] : memref<16x128xf32, #tpu.memory_space<vmem>>, vector<16x128xf32>
    %c0_1 = arith.constant 0 : index
    %c0_2 = arith.constant 0 : index
    %1 = vector.load %arg4[%c0_1, %c0_2] : memref<128x128xf32, #tpu.memory_space<vmem>>, vector<128x128xf32>
    %cst = arith.constant dense<0.000000e+00> : vector<16x128xf32>
    %2 = tpu.matmul %0, %1, %cst {dimension_numbers = #tpu.dot_dimension_numbers<[1], [1], [0], [0], [0, 0, 1, 0], [], []>} : vector<16x128xf32>, vector<128x128xf32>, vector<16x128xf32> -> vector<16x128xf32>
    %c0_3 = arith.constant 0 : index
    %c0_4 = arith.constant 0 : index
    %3 = vector.load %arg6[%c0_3, %c0_4] : memref<1x128xf32, #tpu.memory_space<vmem>>, vector<1x128xf32>
    %4 = vector.broadcast %3 : vector<1x128xf32> to vector<16x128xf32>
    %5 = arith.addf %2, %4 : vector<16x128xf32>
    %c0_5 = arith.constant 0 : index
    %c0_6 = arith.constant 0 : index
    %6 = vector.load %arg5[%c0_5, %c0_6] : memref<128x128xf32, #tpu.memory_space<vmem>>, vector<128x128xf32>
    %cst_7 = arith.constant dense<0.000000e+00> : vector<16x128xf32>
    %7 = tpu.matmul %0, %6, %cst_7 {dimension_numbers = #tpu.dot_dimension_numbers<[1], [1], [0], [0], [0, 0, 1, 0], [], []>} : vector<16x128xf32>, vector<128x128xf32>, vector<16x128xf32> -> vector<16x128xf32>
    %c0_8 = arith.constant 0 : index
    %c0_9 = arith.constant 0 : index
    %8 = vector.load %arg7[%c0_8, %c0_9] : memref<1x128xf32, #tpu.memory_space<vmem>>, vector<1x128xf32>
    %9 = vector.broadcast %8 : vector<1x128xf32> to vector<16x128xf32>
    %10 = arith.addf %7, %9 : vector<16x128xf32>
    %c0_10 = arith.constant 0 : index
    %c0_11 = arith.constant 0 : index
    %11 = vector.load %arg3[%c0_10, %c0_11] : memref<16x128xf32, #tpu.memory_space<vmem>>, vector<16x128xf32>
    %12 = arith.mulf %5, %11 : vector<16x128xf32>
    %13 = arith.addf %12, %10 : vector<16x128xf32>
    %14 = math.tanh %13 : vector<16x128xf32>
    %c0_12 = arith.constant 0 : index
    %c0_13 = arith.constant 0 : index
    %15 = vector.load %arg8[%c0_12, %c0_13] : memref<16x128xf32, #tpu.memory_space<vmem>>, vector<16x128xf32>
    tpu.vector_store %arg8[%c0_12, %c0_13], %14 {strides = array<i32>} : memref<16x128xf32, #tpu.memory_space<vmem>>, vector<16x128xf32>,
    return
  }
  func.func @transform_0(%arg0: i32, %arg1: i32) -> (i32, i32) {
    %c0_i32 = arith.constant 0 : i32
    %c0_i32_0 = arith.constant 0 : i32
    return %arg0, %c0_i32 : i32, i32
  }
  func.func @transform_1(%arg0: i32, %arg1: i32) -> (i32, i32) {
    %c0_i32 = arith.constant 0 : i32
    return %arg0, %arg1 : i32, i32
  }
  func.func @transform_2(%arg0: i32, %arg1: i32) -> (i32, i32) {
    %c0_i32 = arith.constant 0 : i32
    %c0_i32_0 = arith.constant 0 : i32
    return %arg1, %c0_i32 : i32, i32
  }
  func.func @transform_3(%arg0: i32, %arg1: i32) -> (i32, i32) {
    %c0_i32 = arith.constant 0 : i32
    %c0_i32_0 = arith.constant 0 : i32
    return %arg1, %c0_i32 : i32, i32
  }
  func.func @transform_4(%arg0: i32, %arg1: i32) -> (i32, i32) {
    %c0_i32 = arith.constant 0 : i32
    %c0_i32_0 = arith.constant 0 : i32
    return %c0_i32, %arg1 : i32, i32
  }
  func.func @transform_5(%arg0: i32, %arg1: i32) -> (i32, i32) {
    %c0_i32 = arith.constant 0 : i32
    %c0_i32_0 = arith.constant 0 : i32
    return %c0_i32, %arg1 : i32, i32
  }
  func.func @transform_6(%arg0: i32, %arg1: i32) -> (i32, i32) {
    %c0_i32 = arith.constant 0 : i32
    return %arg0, %arg1 : i32, i32
  }
}

</mosaic_0001>

<llo_original>
// kernel: tpu_custom_call.1
$region0: #{tpu_custom_call.1}
  #allocation0 [shape = 'u32[]', space=smem, size = 0x4, offset = 0x4, fixed_abs, tag = 'smem constant byte address 0x4 - core index']
  #allocation1 [shape = 'u32[144,128]{1,0:T(1,128)}', space=vmem, size = 0x12000, scoped, tag = 'internal scratch']
  %s0 = inlined_call_operand.hbm [shape: f32[16,128], index: 0, kind: input, shape index: {}]
  %s1 = inlined_call_operand.hbm [shape: f32[16,128], index: 1, kind: input, shape index: {}]
  %s2 = inlined_call_operand.hbm [shape: f32[128,128], index: 2, kind: input, shape index: {}]
  %s3 = inlined_call_operand.hbm [shape: f32[128,128], index: 3, kind: input, shape index: {}]
  %s4 = inlined_call_operand.vmem [shape: f32[1,128], index: 4, kind: input, shape index: {}]
  %s5 = inlined_call_operand.vmem [shape: f32[1,128], index: 5, kind: input, shape index: {}]
  %s6 = inlined_call_operand.hbm [shape: f32[16,128], index: 6, kind: output, shape index: {}]
  %s7 = sld [smem:[#allocation0]]
  $region50: #{tpu_custom_call.1} parent=0
    _
  %s9 = ssub.s32 1, %s7
  %s10 = scalar_select 0, %s9, %s7
  $region1: #{tpu_custom_call.1} parent=0
    #allocation2 [shape = 'u8[8192]{0}', space=vmem, size = 0x2000, scoped, tag = 'input window, operand 0, single buffered']
    #allocation3 [shape = 's32[1]{0}', space=sflag, size = 0x4, scoped, tag = 'scoped memory for tpu_custom_call.1']
    #allocation4 [shape = 's32[1]{0}', space=sflag, size = 0x4, scoped, tag = 'scoped memory for tpu_custom_call.1']
    #allocation5 [shape = 'u8[8192]{0}', space=vmem, size = 0x2000, scoped, tag = 'input window, operand 1, single buffered']
    #allocation6 [shape = 's32[1]{0}', space=sflag, size = 0x4, scoped, tag = 'scoped memory for tpu_custom_call.1']
    #allocation7 [shape = 'u8[65536]{0}', space=vmem, size = 0x10000, scoped, tag = 'input window, operand 2, single buffered']
    #allocation8 [shape = 'u8[65536]{0}', space=vmem, size = 0x10000, scoped, tag = 'input window, operand 3, single buffered']
    #allocation9 [shape = 's32[1]{0}', space=sflag, size = 0x4, scoped, tag = 'scoped memory for tpu_custom_call.1']
    #allocation10 [shape = 'u8[8192]{0}', space=vmem, size = 0x2000, scoped, tag = 'output window, operand 0, single buffered']
    %11 = vsyncpa [#allocation3], 0
    %12 = vsyncpa [#allocation6], 0
    %13 = vsyncpa [#allocation9], 0
    %14 = vsyncpa [#allocation4], 0
    // Predicated region
    $region2: #{tpu_custom_call.1} parent=1 // pred_check
      _
    $region3: #{tpu_custom_call.1} parent=1 // pred_check_branch
      %16 = sbr.rel (0) target = $region5
    $region4: #{tpu_custom_call.1} parent=1 // pred_region
      %s18 = ssub.s32 256, 256
      %19 = vsyncadd [#allocation3], %s18
      %s20 = sshll.u32 [#allocation2], 4
      %s21 = int_to_ptr.vmem [resolvable:$true] %s20
      %26 = dma.hbm_to_vmem [thread:$0]  %s0, 256, %s21, [#allocation3], 128, 128, 8
    $region5: #{tpu_custom_call.1} parent=1 // pred_fallthru
      _
    // Predicated region
    $region6: #{tpu_custom_call.1} parent=1 // pred_check
      _
    $region7: #{tpu_custom_call.1} parent=1 // pred_check_branch
      %28 = sbr.rel (0) target = $region9
    $region8: #{tpu_custom_call.1} parent=1 // pred_region
      %s30 = ssub.s32 256, 256
      %31 = vsyncadd [#allocation6], %s30
      %s32 = sshll.u32 [#allocation5], 4
      %s33 = int_to_ptr.vmem [resolvable:$true] %s32
      %38 = dma.hbm_to_vmem [thread:$0]  %s1, 256, %s33, [#allocation6], 128, 128, 8
    $region9: #{tpu_custom_call.1} parent=1 // pred_fallthru
      _
    // Predicated region
    $region10: #{tpu_custom_call.1} parent=1 // pred_check
      _
    $region11: #{tpu_custom_call.1} parent=1 // pred_check_branch
      %40 = sbr.rel (0) target = $region13
    $region12: #{tpu_custom_call.1} parent=1 // pred_region
      %s42 = ssub.s32 2048, 2048
      %43 = vsyncadd [#allocation6], %s42
      %s44 = sshll.u32 [#allocation7], 4
      %s45 = int_to_ptr.vmem [resolvable:$true] %s44
      %50 = dma.hbm_to_vmem [thread:$0]  %s2, 2048, %s45, [#allocation6], 128, 128, 8
    $region13: #{tpu_custom_call.1} parent=1 // pred_fallthru
      _
    // Predicated region
    $region14: #{tpu_custom_call.1} parent=1 // pred_check
      _
    $region15: #{tpu_custom_call.1} parent=1 // pred_check_branch
      %52 = sbr.rel (0) target = $region17
    $region16: #{tpu_custom_call.1} parent=1 // pred_region
      %s54 = ssub.s32 2048, 2048
      %55 = vsyncadd [#allocation9], %s54
      %s56 = sshll.u32 [#allocation8], 4
      %s57 = int_to_ptr.vmem [resolvable:$true] %s56
      %62 = dma.hbm_to_vmem [thread:$0]  %s3, 2048, %s57, [#allocation9], 128, 128, 8
    $region17: #{tpu_custom_call.1} parent=1 // pred_fallthru
      _
    // Predicated region
    $region18: #{tpu_custom_call.1} parent=1 // pred_check
      _
    $region19: #{tpu_custom_call.1} parent=1 // pred_check_branch
      %64 = sbr.rel (0) target = $region21
    $region20: #{tpu_custom_call.1} parent=1 // pred_region
      _
    $region21: #{tpu_custom_call.1} parent=1 // pred_fallthru
      _
    // Predicated region
    $region22: #{tpu_custom_call.1} parent=1 // pred_check
      _
    $region23: #{tpu_custom_call.1} parent=1 // pred_check_branch
      %66 = sbr.rel (0) target = $region25
    $region24: #{tpu_custom_call.1} parent=1 // pred_region
      _
    $region25: #{tpu_custom_call.1} parent=1 // pred_fallthru
      _
    // Predicated region
    $region26: #{tpu_custom_call.1} parent=1 // pred_check
      _
    $region27: #{tpu_custom_call.1} parent=1 // pred_check_branch
      %68 = sbr.rel (0) target = $region29
    $region28: #{tpu_custom_call.1} parent=1 // pred_region
      %69 = dma.done [#allocation3], 256
    $region29: #{tpu_custom_call.1} parent=1 // pred_fallthru
      _
    // Predicated region
    $region30: #{tpu_custom_call.1} parent=1 // pred_check
      _
    $region31: #{tpu_custom_call.1} parent=1 // pred_check_branch
      %71 = sbr.rel (0) target = $region33
    $region32: #{tpu_custom_call.1} parent=1 // pred_region
      %72 = dma.done [#allocation6], 256
    $region33: #{tpu_custom_call.1} parent=1 // pred_fallthru
      _
    // Predicated region
    $region34: #{tpu_custom_call.1} parent=1 // pred_check
      _
    $region35: #{tpu_custom_call.1} parent=1 // pred_check_branch
      %74 = sbr.rel (0) target = $region37
    $region36: #{tpu_custom_call.1} parent=1 // pred_region
      %75 = dma.done [#allocation6], 2048
    $region37: #{tpu_custom_call.1} parent=1 // pred_fallthru
      _
    // Predicated region
    $region38: #{tpu_custom_call.1} parent=1 // pred_check
      _
    $region39: #{tpu_custom_call.1} parent=1 // pred_check_branch
      %77 = sbr.rel (0) target = $region41
    $region40: #{tpu_custom_call.1} parent=1 // pred_region
      %78 = dma.done [#allocation9], 2048
    $region41: #{tpu_custom_call.1} parent=1 // pred_fallthru
      _
    %v79 = vld [vmem:[#allocation2] sm:$0xff]
    %v80 = vld [vmem:[#allocation2 + $0x8] sm:$0xff]
    %v81 = vld [vmem:[#allocation7] sm:$0xff]
    %v82 = vld [vmem:[#allocation7 + $0x8] sm:$0xff]
    %v83 = vld [vmem:[#allocation7 + $0x10] sm:$0xff]
    %v84 = vld [vmem:[#allocation7 + $0x18] sm:$0xff]
    %v85 = vld [vmem:[#allocation7 + $0x20] sm:$0xff]
    %v86 = vld [vmem:[#allocation7 + $0x28] sm:$0xff]
    %v87 = vld [vmem:[#allocation7 + $0x30] sm:$0xff]
    %v88 = vld [vmem:[#allocation7 + $0x38] sm:$0xff]
    %v89 = vld [vmem:[#allocation7 + $0x40] sm:$0xff]
    %v90 = vld [vmem:[#allocation7 + $0x48] sm:$0xff]
    %v91 = vld [vmem:[#allocation7 + $0x50] sm:$0xff]
    %v92 = vld [vmem:[#allocation7 + $0x58] sm:$0xff]
    %v93 = vld [vmem:[#allocation7 + $0x60] sm:$0xff]
    %v94 = vld [vmem:[#allocation7 + $0x68] sm:$0xff]
    %v95 = vld [vmem:[#allocation7 + $0x70] sm:$0xff]
    %v96 = vld [vmem:[#allocation7 + $0x78] sm:$0xff]
    %v97 = vld [vmem:[%s4] sm:$0x1]
    %v99 = vlaneseq
    %v100 = vshrl.u32 %v99, 7
    %v101 = vsub.s32 0, %v100
    %v102 = vrot.slane %v97, %v101
    %104 = vmatprep.subr.mxu0 0.0
    %105 = vmatpush1.xpose.msra.mxu0 %v81
    %106 = vmatprep.subr.mxu0 0.0
    %107 = vmatpush1.xpose.msra.mxu0 %v82
    %108 = vmatprep.subr.mxu0 0.0
    %109 = vmatpush1.xpose.msra.mxu0 %v83
    %110 = vmatprep.subr.mxu0 0.0
    %111 = vmatpush1.xpose.msra.mxu0 %v84
    %112 = vmatprep.subr.mxu0 0.0
    %113 = vmatpush1.xpose.msra.mxu0 %v85
    %114 = vmatprep.subr.mxu0 0.0
    %115 = vmatpush1.xpose.msra.mxu0 %v86
    %116 = vmatprep.subr.mxu0 0.0
    %117 = vmatpush1.xpose.msra.mxu0 %v87
    %118 = vmatprep.subr.mxu0 0.0
    %119 = vmatpush1.xpose.msra.mxu0 %v88
    %120 = vmatprep.subr.mxu0 0.0
    %121 = vmatpush1.xpose.msra.mxu0 %v89
    %122 = vmatprep.subr.mxu0 0.0
    %123 = vmatpush1.xpose.msra.mxu0 %v90
    %124 = vmatprep.subr.mxu0 0.0
    %125 = vmatpush1.xpose.msra.mxu0 %v91
    %126 = vmatprep.subr.mxu0 0.0
    %127 = vmatpush1.xpose.msra.mxu0 %v92
    %128 = vmatprep.subr.mxu0 0.0
    %129 = vmatpush1.xpose.msra.mxu0 %v93
    %130 = vmatprep.subr.mxu0 0.0
    %131 = vmatpush1.xpose.msra.mxu0 %v94
    %132 = vmatprep.subr.mxu0 0.0
    %133 = vmatpush1.xpose.msra.mxu0 %v95
    %134 = vmatprep.subr.mxu0 0.0
    %135 = vmatpush1.xpose.msra.mxu0 %v96
    %136 = vmatprep.subr.mxu0 0.0
    %137 = vmatpush1.xpose.msra.mxu0 0.0
    %138 = vmatprep.subr.mxu0 0.0
    %139 = vmatpush1.xpose.msra.mxu0 0.0
    %140 = vmatprep.subr.mxu0 0.0
    %141 = vmatpush1.xpose.msra.mxu0 0.0
    %142 = vmatprep.subr.mxu0 0.0
    %143 = vmatpush1.xpose.msra.mxu0 0.0
    %144 = vmatprep.subr.mxu0 0.0
    %145 = vmatpush1.xpose.msra.mxu0 0.0
    %146 = vmatprep.subr.mxu0 0.0
    %147 = vmatpush1.xpose.msra.mxu0 0.0
    %148 = vmatprep.subr.mxu0 0.0
    %149 = vmatpush1.xpose.msra.mxu0 0.0
    %150 = vmatprep.subr.mxu0 0.0
    %151 = vmatpush1.xpose.msra.mxu0 0.0
    %152 = vmatprep.subr.mxu0 0.0
    %153 = vmatpush1.xpose.msra.mxu0 0.0
    %154 = vmatprep.subr.mxu0 0.0
    %155 = vmatpush1.xpose.msra.mxu0 0.0
    %156 = vmatprep.subr.mxu0 0.0
    %157 = vmatpush1.xpose.msra.mxu0 0.0
    %158 = vmatprep.subr.mxu0 0.0
    %159 = vmatpush1.xpose.msra.mxu0 0.0
    %160 = vmatprep.subr.mxu0 0.0
    %161 = vmatpush1.xpose.msra.mxu0 0.0
    %162 = vmatprep.subr.mxu0 0.0
    %163 = vmatpush1.xpose.msra.mxu0 0.0
    %164 = vmatprep.subr.mxu0 0.0
    %165 = vmatpush1.xpose.msra.mxu0 0.0
    %166 = vmatprep.subr.mxu0 0.0
    %167 = vmatpush1.xpose.msra.mxu0 0.0
    %168 = vmatprep.mubr.f32.mxu0 0.0
    %169 = vmatmul.mubr.f32.gmra.mrb[0].mxu0 %v79
    %v170 = vpop.f32.mrb[0].mxu0
    %v171 = vadd.f32 %v102, %v170
    %v172 = vpop.f32.mrb[0].mxu0
    %173 = vmatprep.mubr.f32.mxu0 0.0
    %174 = vmatmul.mubr.f32.gmra.mrb[0].mxu0 %v80
    %v175 = vpop.f32.mrb[0].mxu0
    %v176 = vadd.f32 %v102, %v175
    %v177 = vpop.f32.mrb[0].mxu0
    %178 = vdwg.mxu0
    %v179 = vld [vmem:[#allocation8] sm:$0xff]
    %v180 = vld [vmem:[#allocation8 + $0x8] sm:$0xff]
    %v181 = vld [vmem:[#allocation8 + $0x10] sm:$0xff]
    %v182 = vld [vmem:[#allocation8 + $0x18] sm:$0xff]
    %v183 = vld [vmem:[#allocation8 + $0x20] sm:$0xff]
    %v184 = vld [vmem:[#allocation8 + $0x28] sm:$0xff]
    %v185 = vld [vmem:[#allocation8 + $0x30] sm:$0xff]
    %v186 = vld [vmem:[#allocation8 + $0x38] sm:$0xff]
    %v187 = vld [vmem:[#allocation8 + $0x40] sm:$0xff]
    %v188 = vld [vmem:[#allocation8 + $0x48] sm:$0xff]
    %v189 = vld [vmem:[#allocation8 + $0x50] sm:$0xff]
    %v190 = vld [vmem:[#allocation8 + $0x58] sm:$0xff]
    %v191 = vld [vmem:[#allocation8 + $0x60] sm:$0xff]
    %v192 = vld [vmem:[#allocation8 + $0x68] sm:$0xff]
    %v193 = vld [vmem:[#allocation8 + $0x70] sm:$0xff]
    %v194 = vld [vmem:[#allocation8 + $0x78] sm:$0xff]
    %v195 = vld [vmem:[%s5] sm:$0x1]
    %v197 = vlaneseq
    %v198 = vshrl.u32 %v197, 7
    %v199 = vsub.s32 0, %v198
    %v200 = vrot.slane %v195, %v199
    %202 = vmatprep.subr.mxu0 0.0
    %203 = vmatpush1.xpose.msra.mxu0 %v179
    %204 = vmatprep.subr.mxu0 0.0
    %205 = vmatpush1.xpose.msra.mxu0 %v180
    %206 = vmatprep.subr.mxu0 0.0
    %207 = vmatpush1.xpose.msra.mxu0 %v181
    %208 = vmatprep.subr.mxu0 0.0
    %209 = vmatpush1.xpose.msra.mxu0 %v182
    %210 = vmatprep.subr.mxu0 0.0
    %211 = vmatpush1.xpose.msra.mxu0 %v183
    %212 = vmatprep.subr.mxu0 0.0
    %213 = vmatpush1.xpose.msra.mxu0 %v184
    %214 = vmatprep.subr.mxu0 0.0
    %215 = vmatpush1.xpose.msra.mxu0 %v185
    %216 = vmatprep.subr.mxu0 0.0
    %217 = vmatpush1.xpose.msra.mxu0 %v186
    %218 = vmatprep.subr.mxu0 0.0
    %219 = vmatpush1.xpose.msra.mxu0 %v187
    %220 = vmatprep.subr.mxu0 0.0
    %221 = vmatpush1.xpose.msra.mxu0 %v188
    %222 = vmatprep.subr.mxu0 0.0
    %223 = vmatpush1.xpose.msra.mxu0 %v189
    %224 = vmatprep.subr.mxu0 0.0
    %225 = vmatpush1.xpose.msra.mxu0 %v190
    %226 = vmatprep.subr.mxu0 0.0
    %227 = vmatpush1.xpose.msra.mxu0 %v191
    %228 = vmatprep.subr.mxu0 0.0
    %229 = vmatpush1.xpose.msra.mxu0 %v192
    %230 = vmatprep.subr.mxu0 0.0
    %231 = vmatpush1.xpose.msra.mxu0 %v193
    %232 = vmatprep.subr.mxu0 0.0
    %233 = vmatpush1.xpose.msra.mxu0 %v194
    %234 = vmatprep.subr.mxu0 0.0
    %235 = vmatpush1.xpose.msra.mxu0 0.0
    %236 = vmatprep.subr.mxu0 0.0
    %237 = vmatpush1.xpose.msra.mxu0 0.0
    %238 = vmatprep.subr.mxu0 0.0
    %239 = vmatpush1.xpose.msra.mxu0 0.0
    %240 = vmatprep.subr.mxu0 0.0
    %241 = vmatpush1.xpose.msra.mxu0 0.0
    %242 = vmatprep.subr.mxu0 0.0
    %243 = vmatpush1.xpose.msra.mxu0 0.0
    %244 = vmatprep.subr.mxu0 0.0
    %245 = vmatpush1.xpose.msra.mxu0 0.0
    %246 = vmatprep.subr.mxu0 0.0
    %247 = vmatpush1.xpose.msra.mxu0 0.0
    %248 = vmatprep.subr.mxu0 0.0
    %249 = vmatpush1.xpose.msra.mxu0 0.0
    %250 = vmatprep.subr.mxu0 0.0
    %251 = vmatpush1.xpose.msra.mxu0 0.0
    %252 = vmatprep.subr.mxu0 0.0
    %253 = vmatpush1.xpose.msra.mxu0 0.0
    %254 = vmatprep.subr.mxu0 0.0
    %255 = vmatpush1.xpose.msra.mxu0 0.0
    %256 = vmatprep.subr.mxu0 0.0
    %257 = vmatpush1.xpose.msra.mxu0 0.0
    %258 = vmatprep.subr.mxu0 0.0
    %259 = vmatpush1.xpose.msra.mxu0 0.0
    %260 = vmatprep.subr.mxu0 0.0
    %261 = vmatpush1.xpose.msra.mxu0 0.0
    %262 = vmatprep.subr.mxu0 0.0
    %263 = vmatpush1.xpose.msra.mxu0 0.0
    %264 = vmatprep.subr.mxu0 0.0
    %265 = vmatpush1.xpose.msra.mxu0 0.0
    %266 = vmatprep.mubr.f32.mxu0 0.0
    %267 = vmatmul.mubr.f32.gmra.mrb[0].mxu0 %v79
    %v268 = vpop.f32.mrb[0].mxu0
    %v269 = vadd.f32 %v200, %v268
    %v270 = vpop.f32.mrb[0].mxu0
    %271 = vmatprep.mubr.f32.mxu0 0.0
    %272 = vmatmul.mubr.f32.gmra.mrb[0].mxu0 %v80
    %v273 = vpop.f32.mrb[0].mxu0
    %v274 = vadd.f32 %v200, %v273
    %v275 = vpop.f32.mrb[0].mxu0
    %276 = vdwg.mxu0
    %v277 = vld [vmem:[#allocation5] sm:$0xff]
    %v278 = vld [vmem:[#allocation5 + $0x8] sm:$0xff]
    %v279 = vmul.f32 %v171, %v277
    %v280 = vmul.f32 %v176, %v278
    %v281 = vadd.f32 %v279, %v269
    %v282 = vadd.f32 %v280, %v274
    %v283 = vtanh.pop %v281
    %v284 = vtanh.pop %v282
    %285 = vst [vmem:[#allocation10] sm:$0xff] %v283
    %286 = vst [vmem:[#allocation10 + $0x8] sm:$0xff] %v284
    // Predicated region
    $region42: #{tpu_custom_call.1} parent=1 // pred_check
      _
    $region43: #{tpu_custom_call.1} parent=1 // pred_check_branch
      %288 = sbr.rel (0) target = $region45
    $region44: #{tpu_custom_call.1} parent=1 // pred_region
      %s290 = ssub.s32 256, 256
      %291 = vsyncadd [#allocation4], %s290
      %s292 = sshll.u32 [#allocation10], 4
      %s293 = int_to_ptr.vmem [resolvable:$true] %s292
      %298 = dma.vmem_to_hbm [thread:$0]  %s293, 256, %s6, [#allocation4], 128, 128, 8
    $region45: #{tpu_custom_call.1} parent=1 // pred_fallthru
      _
    // Predicated region
    $region46: #{tpu_custom_call.1} parent=1 // pred_check
      _
    $region47: #{tpu_custom_call.1} parent=1 // pred_check_branch
      %300 = sbr.rel (0) target = $region49
    $region48: #{tpu_custom_call.1} parent=1 // pred_region
      %301 = dma.done [#allocation4], 256
    $region49: #{tpu_custom_call.1} parent=1 // pred_fallthru
      _
    %302 = vsyncpa [#allocation3], 1
    %303 = vsyncpa [#allocation6], 1
    %304 = vsyncpa [#allocation9], 1
    %305 = vsyncpa [#allocation4], 1

</llo_original>
